<compile_context>
chip_gen: v7x
topology: tpu7x:2x2x1
jax: 0.10.0
libtpu: 0.0.40
codegen_flags: <defaults>
</compile_context>

<pallas_src>
import functools

import jax
import jax.numpy as jnp
from jax.experimental import pallas as pl
from jax.experimental.pallas import tpu as pltpu


def _mca_kernel(x_ref, y_ref, m_ref, wq_ref, wk_ref, wv_ref, wo_ref,
                out_ref, bias_ref, *, scale):
    """One grid step == one (batch, q-tile, head)."""
    h = pl.program_id(2)

    @pl.when(h == 0)
    def _init():
        # Output block is revisited across the head axis -> zero it once, and
        # cache the f32 additive mask bias (int8 -> f32 * -1e9) once per
        # (batch, q-tile) instead of recomputing it for every head.
        out_ref[...] = jnp.zeros_like(out_ref)
        bias_ref[...] = m_ref[...].astype(jnp.float32) * jnp.float32(-1e9)

    x = x_ref[...]                       # (tq, dim)  bf16
    y = y_ref[...]                       # (Tk, dim)  bf16

    # Per-head projections: 2-D bf16 MXU matmuls, f32 accumulation.
    q = jnp.dot(x, wq_ref[...], preferred_element_type=jnp.float32) * scale
    k = jnp.dot(y, wk_ref[...], preferred_element_type=jnp.float32)
    v = jnp.dot(y, wv_ref[...], preferred_element_type=jnp.float32)

    # logits = q @ k^T, expressed by contracting the dim_head axis of both
    # operands directly (no explicit transpose of k -> no XLU transpose).
    s = jax.lax.dot_general(
        q.astype(jnp.bfloat16), k.astype(jnp.bfloat16),
        dimension_numbers=(((1,), (1,)), ((), ())),
        preferred_element_type=jnp.float32)              # (tq, Tk) f32
    s = s + bias_ref[...]

    # Softmax over the key axis, kept in f32.
    s = s - jnp.max(s, axis=-1, keepdims=True)
    p = jnp.exp(s)
    p = p * pl.reciprocal(jnp.sum(p, axis=-1, keepdims=True), approx=True)

    # P @ V and this head's slice of the output projection, accumulated
    # straight into the resident f32 output block.
    o = jnp.dot(p.astype(jnp.bfloat16), v.astype(jnp.bfloat16),
                preferred_element_type=jnp.float32)       # (tq, dim_head)
    out_ref[...] += jnp.dot(o.astype(jnp.bfloat16), wo_ref[...],
                            preferred_element_type=jnp.float32)   # (tq, dim)


def _pick_q_tile(tq_total):
    """Largest q-tile <= 512 that divides Tq and is sublane (8) aligned."""
    if tq_total <= 512:
        return tq_total
    for t in (512, 256, 128, 64, 32, 16, 8):
        if tq_total % t == 0:
            return t
    return tq_total   # fall back to whole-Tq residency


def masked_cross_attention(x, y, mask, wq, wk, wv, wo, *, heads, dim_head):
    """x: [B, Tq, dim], y: [B, Tk, dim], mask: [B, Tq, Tk] -> [B, Tq, dim]."""
    B, Tq, dim = x.shape
    _, Tk, _ = y.shape
    scale = dim_head ** (-0.5)

    # bf16 matmul operands; int8 mask (4x less HBM traffic for the largest
    # input of this kernel).
    xb = x.astype(jnp.bfloat16)
    yb = y.astype(jnp.bfloat16)
    m8 = mask.astype(jnp.int8)
    # Per-head weight layout so BlockSpec (not in-kernel lane slicing) selects
    # the head: (heads, dim, dim_head) for q/k/v, (heads, dim_head, dim) for o.
    wq3 = wq.reshape(dim, heads, dim_head).transpose(1, 0, 2).astype(jnp.bfloat16)
    wk3 = wk.reshape(dim, heads, dim_head).transpose(1, 0, 2).astype(jnp.bfloat16)
    wv3 = wv.reshape(dim, heads, dim_head).transpose(1, 0, 2).astype(jnp.bfloat16)
    wo3 = wo.reshape(heads, dim_head, dim).astype(jnp.bfloat16)

    tq = _pick_q_tile(Tq)
    n_q = Tq // tq

    kernel = functools.partial(_mca_kernel, scale=scale)

    # Rough per-step VMEM budget (double-buffered blocks + scratch + slack) so
    # large shapes are not starved by the 32 MiB default scoped limit; at the
    # small test shapes this stays at the 32 MiB default.
    block_bytes = 2 * (tq * dim * 2 + Tk * dim * 2 + tq * Tk * 1
                       + 3 * dim * dim_head * 2 + dim_head * dim * 2
                       + tq * dim * 4) + tq * Tk * 4
    vmem_limit = int(min(96 * 1024 * 1024,
                         max(32 * 1024 * 1024, 3 * block_bytes)))

    return pl.pallas_call(
        kernel,
        out_shape=jax.ShapeDtypeStruct((B, Tq, dim), jnp.float32),
        grid_spec=pltpu.PrefetchScalarGridSpec(
            num_scalar_prefetch=0,
            grid=(B, n_q, heads),
            in_specs=[
                pl.BlockSpec((pl.Squeezed(), tq, dim),
                             lambda b, qi, h: (b, qi, 0)),             # x
                pl.BlockSpec((pl.Squeezed(), Tk, dim),
                             lambda b, qi, h: (b, 0, 0)),              # y
                pl.BlockSpec((pl.Squeezed(), tq, Tk),
                             lambda b, qi, h: (b, qi, 0)),             # mask
                pl.BlockSpec((pl.Squeezed(), dim, dim_head),
                             lambda b, qi, h: (h, 0, 0)),              # Wq[h]
                pl.BlockSpec((pl.Squeezed(), dim, dim_head),
                             lambda b, qi, h: (h, 0, 0)),              # Wk[h]
                pl.BlockSpec((pl.Squeezed(), dim, dim_head),
                             lambda b, qi, h: (h, 0, 0)),              # Wv[h]
                pl.BlockSpec((pl.Squeezed(), dim_head, dim),
                             lambda b, qi, h: (h, 0, 0)),              # Wo[h]
            ],
            out_specs=pl.BlockSpec((pl.Squeezed(), tq, dim),
                                   lambda b, qi, h: (b, qi, 0)),
            scratch_shapes=[pltpu.VMEM((tq, Tk), jnp.float32)],        # bias
        ),
        compiler_params=pltpu.CompilerParams(
            dimension_semantics=("parallel", "parallel", "arbitrary"),
            vmem_limit_bytes=vmem_limit),
    )(xb, yb, m8, wq3, wk3, wv3, wo3)


def _reference(x, y, mask, wq, wk, wv, wo, *, heads, dim_head):
    """Pure-JAX f32 mirror of the PyTorch forward()."""
    scale = dim_head ** (-0.5)
    q = (x @ wq) * scale
    k = y @ wk
    v = y @ wv
    outs = []
    for h in range(heads):
        sl = slice(h * dim_head, (h + 1) * dim_head)
        logits = jnp.einsum("bqd,bkd->bqk", q[..., sl], k[..., sl])
        logits = logits + mask * (-1e9)
        p = jax.nn.softmax(logits, axis=-1)
        outs.append(jnp.einsum("bqk,bkd->bqd", p, v[..., sl]))
    attn = jnp.concatenate(outs, axis=-1)
    return attn @ wo


if __name__ == "__main__":
    # Small deterministic problem.
    B, Tq, Tk = 2, 8, 16
    dim, dim_head, heads = 32, 16, 4
    inner_dim = dim_head * heads

    key = jax.random.PRNGKey(0)
    kx, ky, km, k1, k2, k3, k4 = jax.random.split(key, 7)

    x = jax.random.normal(kx, (B, Tq, dim), dtype=jnp.float32)
    y = jax.random.normal(ky, (B, Tk, dim), dtype=jnp.float32)
    # Binary mask (1 = blocked), as in the reference usage.
    mask = (jax.random.uniform(km, (B, Tq, Tk)) < 0.3).astype(jnp.float32)

    # Linear layers with no bias; stored as [in, out] (PyTorch W.T).
    wq = jax.random.normal(k1, (dim, inner_dim), dtype=jnp.float32) * 0.05
    wk = jax.random.normal(k2, (dim, inner_dim), dtype=jnp.float32) * 0.05
    wv = jax.random.normal(k3, (dim, inner_dim), dtype=jnp.float32) * 0.05
    wo = jax.random.normal(k4, (inner_dim, dim), dtype=jnp.float32) * 0.05

    out = masked_cross_attention(x, y, mask, wq, wk, wv, wo,
                                 heads=heads, dim_head=dim_head)
    out = jax.block_until_ready(out)

    ref = _reference(x, y, mask, wq, wk, wv, wo,
                     heads=heads, dim_head=dim_head)

    assert out.shape == (B, Tq, dim)
    # bf16 matmul operands + approx reciprocal vs. a pure-f32 reference.
    assert jnp.allclose(out, ref, atol=2e-2, rtol=2e-2), "mismatch vs reference"
    print("KERNEL_OK")
</pallas_src>

<mosaic_0001>
module attributes {stable_mosaic.version = 11 : i64} {
  func.func @_mca_kernel(%arg0: i32, %arg1: i32, %arg2: i32, %arg3: memref<1x8x32xbf16, #tpu.memory_space<vmem>>, %arg4: memref<1x16x32xbf16, #tpu.memory_space<vmem>>, %arg5: memref<1x8x16xi8, #tpu.memory_space<vmem>>, %arg6: memref<1x32x16xbf16, #tpu.memory_space<vmem>>, %arg7: memref<1x32x16xbf16, #tpu.memory_space<vmem>>, %arg8: memref<1x32x16xbf16, #tpu.memory_space<vmem>>, %arg9: memref<1x16x32xbf16, #tpu.memory_space<vmem>>, %arg10: memref<1x8x32xf32, #tpu.memory_space<vmem>>, %arg11: memref<8x16xf32, #tpu.memory_space<vmem>>) attributes {dimension_semantics = [#tpu.dimension_semantics<parallel>, #tpu.dimension_semantics<parallel>, #tpu.dimension_semantics<arbitrary>], iteration_bounds = array<i64: 2, 1, 4>, scalar_prefetch = 0 : i64, scratch_operands = 1 : i64, tpu.core_type = #tpu.core_type<tc>, window_params = [{transform_indices = @transform_0, window_bounds = array<i64: 1, 8, 32>}, {transform_indices = @transform_1, window_bounds = array<i64: 1, 16, 32>}, {transform_indices = @transform_2, window_bounds = array<i64: 1, 8, 16>}, {transform_indices = @transform_3, window_bounds = array<i64: 1, 32, 16>}, {transform_indices = @transform_4, window_bounds = array<i64: 1, 32, 16>}, {transform_indices = @transform_5, window_bounds = array<i64: 1, 32, 16>}, {transform_indices = @transform_6, window_bounds = array<i64: 1, 16, 32>}, {transform_indices = @transform_7, window_bounds = array<i64: 1, 8, 32>}]} {
    %c0_i32 = arith.constant 0 : i32
    %0 = arith.cmpi eq, %arg2, %c0_i32 : i32
    %1 = arith.extui %0 : i1 to i32
    %c0_i32_0 = arith.constant 0 : i32
    %2 = arith.cmpi ne, %1, %c0_i32_0 : i32
    scf.if %2 {
      %cst_34 = arith.constant 0.000000e+00 : f32
      %46 = vector.broadcast %cst_34 : f32 to vector<8x32xf32>
      %c0_35 = arith.constant 0 : index
      %c0_36 = arith.constant 0 : index
      %c0_37 = arith.constant 0 : index
      %47 = vector.load %arg10[%c0_35, %c0_36, %c0_37] : memref<1x8x32xf32, #tpu.memory_space<vmem>>, vector<1x8x32xf32>
      %48 = vector.shape_cast %47 : vector<1x8x32xf32> to vector<8x32xf32>
      %49 = vector.shape_cast %46 : vector<8x32xf32> to vector<1x8x32xf32>
      tpu.vector_store %arg10[%c0_35, %c0_36, %c0_37], %49 {strides = array<i32>} : memref<1x8x32xf32, #tpu.memory_space<vmem>>, vector<1x8x32xf32>,
      %c0_38 = arith.constant 0 : index
      %c0_39 = arith.constant 0 : index
      %c0_40 = arith.constant 0 : index
      %50 = vector.load %arg5[%c0_38, %c0_39, %c0_40] : memref<1x8x16xi8, #tpu.memory_space<vmem>>, vector<1x8x16xi8>
      %51 = vector.shape_cast %50 : vector<1x8x16xi8> to vector<8x16xi8>
      %52 = arith.sitofp %51 : vector<8x16xi8> to vector<8x16xf32>
      %cst_41 = arith.constant -1.000000e+09 : f32
      %53 = vector.broadcast %cst_41 : f32 to vector<8x16xf32>
      %54 = arith.mulf %52, %53 : vector<8x16xf32>
      %c0_42 = arith.constant 0 : index
      %c0_43 = arith.constant 0 : index
      %55 = vector.load %arg11[%c0_42, %c0_43] : memref<8x16xf32, #tpu.memory_space<vmem>>, vector<8x16xf32>
      tpu.vector_store %arg11[%c0_42, %c0_43], %54 {strides = array<i32>} : memref<8x16xf32, #tpu.memory_space<vmem>>, vector<8x16xf32>,
    } else {
    }
    %c0 = arith.constant 0 : index
    %c0_1 = arith.constant 0 : index
    %c0_2 = arith.constant 0 : index
    %3 = vector.load %arg3[%c0, %c0_1, %c0_2] : memref<1x8x32xbf16, #tpu.memory_space<vmem>>, vector<1x8x32xbf16>
    %4 = vector.shape_cast %3 : vector<1x8x32xbf16> to vector<8x32xbf16>
    %c0_3 = arith.constant 0 : index
    %c0_4 = arith.constant 0 : index
    %c0_5 = arith.constant 0 : index
    %5 = vector.load %arg4[%c0_3, %c0_4, %c0_5] : memref<1x16x32xbf16, #tpu.memory_space<vmem>>, vector<1x16x32xbf16>
    %6 = vector.shape_cast %5 : vector<1x16x32xbf16> to vector<16x32xbf16>
    %c0_6 = arith.constant 0 : index
    %c0_7 = arith.constant 0 : index
    %c0_8 = arith.constant 0 : index
    %7 = vector.load %arg6[%c0_6, %c0_7, %c0_8] : memref<1x32x16xbf16, #tpu.memory_space<vmem>>, vector<1x32x16xbf16>
    %8 = vector.shape_cast %7 : vector<1x32x16xbf16> to vector<32x16xbf16>
    %cst = arith.constant dense<0.000000e+00> : vector<8x16xf32>
    %9 = tpu.matmul %4, %8, %cst {dimension_numbers = #tpu.dot_dimension_numbers<[1], [0], [0], [1], [0, 0, 1, 1], [], []>} : vector<8x32xbf16>, vector<32x16xbf16>, vector<8x16xf32> -> vector<8x16xf32>
    %cst_9 = arith.constant 2.500000e-01 : f32
    %10 = vector.broadcast %cst_9 : f32 to vector<8x16xf32>
    %11 = arith.mulf %9, %10 : vector<8x16xf32>
    %c0_10 = arith.constant 0 : index
    %c0_11 = arith.constant 0 : index
    %c0_12 = arith.constant 0 : index
    %12 = vector.load %arg7[%c0_10, %c0_11, %c0_12] : memref<1x32x16xbf16, #tpu.memory_space<vmem>>, vector<1x32x16xbf16>
    %13 = vector.shape_cast %12 : vector<1x32x16xbf16> to vector<32x16xbf16>
    %cst_13 = arith.constant dense<0.000000e+00> : vector<16x16xf32>
    %14 = tpu.matmul %6, %13, %cst_13 {dimension_numbers = #tpu.dot_dimension_numbers<[1], [0], [0], [1], [0, 0, 1, 1], [], []>} : vector<16x32xbf16>, vector<32x16xbf16>, vector<16x16xf32> -> vector<16x16xf32>
    %c0_14 = arith.constant 0 : index
    %c0_15 = arith.constant 0 : index
    %c0_16 = arith.constant 0 : index
    %15 = vector.load %arg8[%c0_14, %c0_15, %c0_16] : memref<1x32x16xbf16, #tpu.memory_space<vmem>>, vector<1x32x16xbf16>
    %16 = vector.shape_cast %15 : vector<1x32x16xbf16> to vector<32x16xbf16>
    %cst_17 = arith.constant dense<0.000000e+00> : vector<16x16xf32>
    %17 = tpu.matmul %6, %16, %cst_17 {dimension_numbers = #tpu.dot_dimension_numbers<[1], [0], [0], [1], [0, 0, 1, 1], [], []>} : vector<16x32xbf16>, vector<32x16xbf16>, vector<16x16xf32> -> vector<16x16xf32>
    %18 = arith.truncf %11 : vector<8x16xf32> to vector<8x16xbf16>
    %19 = arith.truncf %14 : vector<16x16xf32> to vector<16x16xbf16>
    %cst_18 = arith.constant dense<0.000000e+00> : vector<8x16xf32>
    %20 = tpu.matmul %18, %19, %cst_18 {dimension_numbers = #tpu.dot_dimension_numbers<[1], [1], [0], [0], [0, 0, 1, 0], [], []>} : vector<8x16xbf16>, vector<16x16xbf16>, vector<8x16xf32> -> vector<8x16xf32>
    %c0_19 = arith.constant 0 : index
    %c0_20 = arith.constant 0 : index
    %21 = vector.load %arg11[%c0_19, %c0_20] : memref<8x16xf32, #tpu.memory_space<vmem>>, vector<8x16xf32>
    %22 = arith.addf %20, %21 : vector<8x16xf32>
    %cst_21 = arith.constant dense<0xFF800000> : vector<8xf32>
    %23 = vector.multi_reduction <maximumf>, %22, %cst_21 [1] : vector<8x16xf32> to vector<8xf32>
    %24 = vector.shape_cast %23 : vector<8xf32> to vector<8x1xf32>
    %25 = vector.broadcast %24 : vector<8x1xf32> to vector<8x16xf32>
    %26 = arith.subf %22, %25 : vector<8x16xf32>
    %27 = math.exp %26 : vector<8x16xf32>
    %cst_22 = arith.constant dense<0.000000e+00> : vector<8xf32>
    %28 = vector.multi_reduction <add>, %27, %cst_22 [1] : vector<8x16xf32> to vector<8xf32>
    %29 = vector.shape_cast %28 : vector<8xf32> to vector<8x1xf32>
    %30 = tpu.reciprocal %29 {approx = true} : vector<8x1xf32> -> vector<8x1xf32>
    %31 = vector.broadcast %30 : vector<8x1xf32> to vector<8x16xf32>
    %32 = arith.mulf %27, %31 : vector<8x16xf32>
    %33 = arith.truncf %32 : vector<8x16xf32> to vector<8x16xbf16>
    %34 = arith.truncf %17 : vector<16x16xf32> to vector<16x16xbf16>
    %cst_23 = arith.constant dense<0.000000e+00> : vector<8x16xf32>
    %35 = tpu.matmul %33, %34, %cst_23 {dimension_numbers = #tpu.dot_dimension_numbers<[1], [0], [0], [1], [0, 0, 1, 1], [], []>} : vector<8x16xbf16>, vector<16x16xbf16>, vector<8x16xf32> -> vector<8x16xf32>
    %c0_24 = arith.constant 0 : index
    %c0_25 = arith.constant 0 : index
    %c0_26 = arith.constant 0 : index
    %36 = vector.load %arg10[%c0_24, %c0_25, %c0_26] : memref<1x8x32xf32, #tpu.memory_space<vmem>>, vector<1x8x32xf32>
    %37 = vector.shape_cast %36 : vector<1x8x32xf32> to vector<8x32xf32>
    %38 = arith.truncf %35 : vector<8x16xf32> to vector<8x16xbf16>
    %c0_27 = arith.constant 0 : index
    %c0_28 = arith.constant 0 : index
    %c0_29 = arith.constant 0 : index
    %39 = vector.load %arg9[%c0_27, %c0_28, %c0_29] : memref<1x16x32xbf16, #tpu.memory_space<vmem>>, vector<1x16x32xbf16>
    %40 = vector.shape_cast %39 : vector<1x16x32xbf16> to vector<16x32xbf16>
    %cst_30 = arith.constant dense<0.000000e+00> : vector<8x32xf32>
    %41 = tpu.matmul %38, %40, %cst_30 {dimension_numbers = #tpu.dot_dimension_numbers<[1], [0], [0], [1], [0, 0, 1, 1], [], []>} : vector<8x16xbf16>, vector<16x32xbf16>, vector<8x32xf32> -> vector<8x32xf32>
    %42 = arith.addf %37, %41 : vector<8x32xf32>
    %c0_31 = arith.constant 0 : index
    %c0_32 = arith.constant 0 : index
    %c0_33 = arith.constant 0 : index
    %43 = vector.load %arg10[%c0_31, %c0_32, %c0_33] : memref<1x8x32xf32, #tpu.memory_space<vmem>>, vector<1x8x32xf32>
    %44 = vector.shape_cast %43 : vector<1x8x32xf32> to vector<8x32xf32>
    %45 = vector.shape_cast %42 : vector<8x32xf32> to vector<1x8x32xf32>
    tpu.vector_store %arg10[%c0_31, %c0_32, %c0_33], %45 {strides = array<i32>} : memref<1x8x32xf32, #tpu.memory_space<vmem>>, vector<1x8x32xf32>,
    return
  }
  func.func @transform_0(%arg0: i32, %arg1: i32, %arg2: i32) -> (i32, i32, i32) {
    %c0_i32 = arith.constant 0 : i32
    %c0_i32_0 = arith.constant 0 : i32
    return %arg0, %arg1, %c0_i32 : i32, i32, i32
  }
  func.func @transform_1(%arg0: i32, %arg1: i32, %arg2: i32) -> (i32, i32, i32) {
    %c0_i32 = arith.constant 0 : i32
    %c0_i32_0 = arith.constant 0 : i32
    %c0_i32_1 = arith.constant 0 : i32
    return %arg0, %c0_i32, %c0_i32_0 : i32, i32, i32
  }
  func.func @transform_2(%arg0: i32, %arg1: i32, %arg2: i32) -> (i32, i32, i32) {
    %c0_i32 = arith.constant 0 : i32
    %c0_i32_0 = arith.constant 0 : i32
    return %arg0, %arg1, %c0_i32 : i32, i32, i32
  }
  func.func @transform_3(%arg0: i32, %arg1: i32, %arg2: i32) -> (i32, i32, i32) {
    %c0_i32 = arith.constant 0 : i32
    %c0_i32_0 = arith.constant 0 : i32
    %c0_i32_1 = arith.constant 0 : i32
    return %arg2, %c0_i32, %c0_i32_0 : i32, i32, i32
  }
  func.func @transform_4(%arg0: i32, %arg1: i32, %arg2: i32) -> (i32, i32, i32) {
    %c0_i32 = arith.constant 0 : i32
    %c0_i32_0 = arith.constant 0 : i32
    %c0_i32_1 = arith.constant 0 : i32
    return %arg2, %c0_i32, %c0_i32_0 : i32, i32, i32
  }
  func.func @transform_5(%arg0: i32, %arg1: i32, %arg2: i32) -> (i32, i32, i32) {
    %c0_i32 = arith.constant 0 : i32
    %c0_i32_0 = arith.constant 0 : i32
    %c0_i32_1 = arith.constant 0 : i32
    return %arg2, %c0_i32, %c0_i32_0 : i32, i32, i32
  }
  func.func @transform_6(%arg0: i32, %arg1: i32, %arg2: i32) -> (i32, i32, i32) {
    %c0_i32 = arith.constant 0 : i32
    %c0_i32_0 = arith.constant 0 : i32
    %c0_i32_1 = arith.constant 0 : i32
    return %arg2, %c0_i32, %c0_i32_0 : i32, i32, i32
  }
  func.func @transform_7(%arg0: i32, %arg1: i32, %arg2: i32) -> (i32, i32, i32) {
    %c0_i32 = arith.constant 0 : i32
    %c0_i32_0 = arith.constant 0 : i32
    return %arg0, %arg1, %c0_i32 : i32, i32, i32
  }
}

</mosaic_0001>

<llo_original>
// kernel: tpu_custom_call.1
$region0: #{tpu_custom_call.1}
  #allocation0 [shape = 'u32[]', space=smem, size = 0x4, offset = 0x4, fixed_abs, tag = 'smem constant byte address 0x4 - core index']
  #allocation1 [shape = 'u32[144,128]{1,0:T(1,128)}', space=vmem, size = 0x12000, scoped, tag = 'internal scratch']
  #allocation2 [shape = 'f32[8,16]{1,0:T(8,128)}', space=vmem, size = 0x1000, scoped, tag = 'scratch operand']
  %s0 = inlined_call_operand.vmem [shape: bf16[2,8,32], index: 0, kind: input, shape index: {}]
  %s1 = inlined_call_operand.vmem [shape: bf16[2,16,32], index: 1, kind: input, shape index: {}]
  %s2 = inlined_call_operand.vmem [shape: s8[2,8,16], index: 2, kind: input, shape index: {}]
  %s3 = inlined_call_operand.vmem [shape: bf16[4,32,16], index: 3, kind: input, shape index: {}]
  %s4 = inlined_call_operand.vmem [shape: bf16[4,32,16], index: 4, kind: input, shape index: {}]
  %s5 = inlined_call_operand.vmem [shape: bf16[4,32,16], index: 5, kind: input, shape index: {}]
  %s6 = inlined_call_operand.vmem [shape: bf16[4,16,32], index: 6, kind: input, shape index: {}]
  %s7 = inlined_call_operand.hbm [shape: f32[2,8,32], index: 7, kind: output, shape index: {}]
  %s8 = sld [smem:[#allocation0]]
  $region65: #{tpu_custom_call.1} parent=0
    _
  %s10 = ssub.s32 1, %s8
  %s11 = scalar_select 0, %s10, %s8
  $region1: #{tpu_custom_call.1} parent=0
    #allocation3 [shape = 'u8[8192]{0}', space=vmem, size = 0x2000, scoped, tag = 'output window, operand 0']
    #allocation4 [shape = 's32[2]{0}', space=sflag, size = 0x8, scoped, tag = 'scoped memory for tpu_custom_call.1']
    %12 = vsyncpa [#allocation4], 0
    %s13 = scalar_lea.sflag [#allocation4], 1
    %14 = vsyncpa %s13, 0
    loop: start=0, step=1, limit=10
    $region2: #{tpu_custom_call.1} parent=1 // loop_pre_header
      _
    $region3: #{tpu_custom_call.1} parent=1 // loop_header
      %s16 = sphi 0, %s20
      %p17 = scmp.ge.s32.totalorder %s16, 10
      %s23 = sphi 0, %s42
      %s24 = sphi 0, %s38
      %s25 = sphi 0, %s34
      %s26 = sphi 0, %s23
      %s27 = sphi 0, %s24
      %s28 = sphi 0, %s25
      %s29 = sphi 0, %s26
      %s30 = sphi 0, %s27
      %s31 = sphi 0, %s28
      %s47 = sphi 0, %s49
      %s50 = sphi 0, %s47
      %s51 = sphi 0, %s50
      %s67 = sphi 0, %s51
      %s73 = sphi 0, %s75
      %s76 = sphi 0, %s73
      %s77 = sphi 0, %s76
      %s93 = sphi 0, %s77
      %s101 = sphi 0, %s103
      %s104 = sphi 0, %s101
      %s105 = sphi 0, %s104
      %s121 = sphi 0, %s105
      %s127 = sphi 0, %s129
      %s130 = sphi 0, %s127
      %s131 = sphi 0, %s130
      %s147 = sphi 0, %s131
      %s153 = sphi 0, %s155
      %s156 = sphi 0, %s153
      %s157 = sphi 0, %s156
      %s173 = sphi 0, %s157
      %s179 = sphi 0, %s181
      %s182 = sphi 0, %s179
      %s183 = sphi 0, %s182
      %s199 = sphi 0, %s183
      %s205 = sphi 0, %s207
      %s208 = sphi 0, %s205
      %s209 = sphi 0, %s208
      %s225 = sphi 0, %s209
      %s233 = sphi 0, %s235
      %s236 = sphi 0, %s233
      %s237 = sphi 0, %s236
      %s253 = sphi 0, %s237
    $region4: #{tpu_custom_call.1} parent=1 // loop_header_branch
      %19 = sbr.rel (%p17) target = $region8
    $region5: #{tpu_custom_call.1} parent=1 // loop_body
      %s21 = ssub.s32 %s16, 1
      %s22 = ssub.s32 %s16, 2
      %s32 = sadd.s32 1, %s25
      %p33 = scmp.ge.s32.totalorder %s32, 4
      %s34 = scalar_select %p33, 0, %s32
      %s35 = sadd.s32 1, %s24
      %s36 = scalar_select %p33, %s35, %s24
      %p37 = scmp.ge.s32.totalorder %s36, 1
      %s38 = scalar_select %p37, 0, %s36
      %s39 = sadd.s32 1, %s23
      %s40 = scalar_select %p37, %s39, %s23
      %p41 = scmp.ge.s32.totalorder %s40, 2
      %s42 = scalar_select %p41, 0, %s40
      %s43 = ssub.s32 %s23, %s42
      %s44 = ssub.s32 %s24, %s38
      %s45 = sor.u32 %s43, %s44
      %p46 = scmp.eq.s32.totalorder %s45, 0
      %s48 = sadd.s32 %s47, 1
      %s49 = scalar_select %p46, %s47, %s48
      %p52 = pneg %p46
      %p53 = scmp.eq.s32.totalorder %s16, 7
      %p54 = por %p52, %p53
      %p55 = scmp.ne.s32.totalorder %s47, %s50
      %p56 = scmp.eq.s32.totalorder %s16, 0
      %p57 = por %p55, %p56
      %p58 = scmp.ne.s32.totalorder %s47, %s50
      %p59 = scmp.eq.s32.totalorder %s21, 7
      %p60 = por %p58, %p59
      %p61 = scmp.ne.s32.totalorder %s50, %s51
      %p62 = scmp.eq.s32.totalorder %s21, 0
      %p63 = por %p61, %p62
      %p64 = scmp.ne.s32.totalorder %s50, %s51
      %p65 = scmp.eq.s32.totalorder %s22, 7
      %p66 = por %p64, %p65
      %p68 = scmp.ne.s32.totalorder %s51, %s67
      %p69 = scmp.eq.s32.totalorder %s22, 0
      %p70 = por %p68, %p69
      %s71 = ssub.s32 %s23, %s42
      %p72 = scmp.eq.s32.totalorder %s71, 0
      %s74 = sadd.s32 %s73, 1
      %s75 = scalar_select %p72, %s73, %s74
      %p78 = pneg %p72
      %p79 = scmp.eq.s32.totalorder %s16, 7
      %p80 = por %p78, %p79
      %p81 = scmp.ne.s32.totalorder %s73, %s76
      %p82 = scmp.eq.s32.totalorder %s16, 0
      %p83 = por %p81, %p82
      %p84 = scmp.ne.s32.totalorder %s73, %s76
      %p85 = scmp.eq.s32.totalorder %s21, 7
      %p86 = por %p84, %p85
      %p87 = scmp.ne.s32.totalorder %s76, %s77
      %p88 = scmp.eq.s32.totalorder %s21, 0
      %p89 = por %p87, %p88
      %p90 = scmp.ne.s32.totalorder %s76, %s77
      %p91 = scmp.eq.s32.totalorder %s22, 7
      %p92 = por %p90, %p91
      %p94 = scmp.ne.s32.totalorder %s77, %s93
      %p95 = scmp.eq.s32.totalorder %s22, 0
      %p96 = por %p94, %p95
      %s97 = ssub.s32 %s23, %s42
      %s98 = ssub.s32 %s24, %s38
      %s99 = sor.u32 %s97, %s98
      %p100 = scmp.eq.s32.totalorder %s99, 0
      %s102 = sadd.s32 %s101, 1
      %s103 = scalar_select %p100, %s101, %s102
      %p106 = pneg %p100
      %p107 = scmp.eq.s32.totalorder %s16, 7
      %p108 = por %p106, %p107
      %p109 = scmp.ne.s32.totalorder %s101, %s104
      %p110 = scmp.eq.s32.totalorder %s16, 0
      %p111 = por %p109, %p110
      %p112 = scmp.ne.s32.totalorder %s101, %s104
      %p113 = scmp.eq.s32.totalorder %s21, 7
      %p114 = por %p112, %p113
      %p115 = scmp.ne.s32.totalorder %s104, %s105
      %p116 = scmp.eq.s32.totalorder %s21, 0
      %p117 = por %p115, %p116
      %p118 = scmp.ne.s32.totalorder %s104, %s105
      %p119 = scmp.eq.s32.totalorder %s22, 7
      %p120 = por %p118, %p119
      %p122 = scmp.ne.s32.totalorder %s105, %s121
      %p123 = scmp.eq.s32.totalorder %s22, 0
      %p124 = por %p122, %p123
      %s125 = ssub.s32 %s25, %s34
      %p126 = scmp.eq.s32.totalorder %s125, 0
      %s128 = sadd.s32 %s127, 1
      %s129 = scalar_select %p126, %s127, %s128
      %p132 = pneg %p126
      %p133 = scmp.eq.s32.totalorder %s16, 7
      %p134 = por %p132, %p133
      %p135 = scmp.ne.s32.totalorder %s127, %s130
      %p136 = scmp.eq.s32.totalorder %s16, 0
      %p137 = por %p135, %p136
      %p138 = scmp.ne.s32.totalorder %s127, %s130
      %p139 = scmp.eq.s32.totalorder %s21, 7
      %p140 = por %p138, %p139
      %p141 = scmp.ne.s32.totalorder %s130, %s131
      %p142 = scmp.eq.s32.totalorder %s21, 0
      %p143 = por %p141, %p142
      %p144 = scmp.ne.s32.totalorder %s130, %s131
      %p145 = scmp.eq.s32.totalorder %s22, 7
      %p146 = por %p144, %p145
      %p148 = scmp.ne.s32.totalorder %s131, %s147
      %p149 = scmp.eq.s32.totalorder %s22, 0
      %p150 = por %p148, %p149
      %s151 = ssub.s32 %s25, %s34
      %p152 = scmp.eq.s32.totalorder %s151, 0
      %s154 = sadd.s32 %s153, 1
      %s155 = scalar_select %p152, %s153, %s154
      %p158 = pneg %p152
      %p159 = scmp.eq.s32.totalorder %s16, 7
      %p160 = por %p158, %p159
      %p161 = scmp.ne.s32.totalorder %s153, %s156
      %p162 = scmp.eq.s32.totalorder %s16, 0
      %p163 = por %p161, %p162
      %p164 = scmp.ne.s32.totalorder %s153, %s156
      %p165 = scmp.eq.s32.totalorder %s21, 7
      %p166 = por %p164, %p165
      %p167 = scmp.ne.s32.totalorder %s156, %s157
      %p168 = scmp.eq.s32.totalorder %s21, 0
      %p169 = por %p167, %p168
      %p170 = scmp.ne.s32.totalorder %s156, %s157
      %p171 = scmp.eq.s32.totalorder %s22, 7
      %p172 = por %p170, %p171
      %p174 = scmp.ne.s32.totalorder %s157, %s173
      %p175 = scmp.eq.s32.totalorder %s22, 0
      %p176 = por %p174, %p175
      %s177 = ssub.s32 %s25, %s34
      %p178 = scmp.eq.s32.totalorder %s177, 0
      %s180 = sadd.s32 %s179, 1
      %s181 = scalar_select %p178, %s179, %s180
      %p184 = pneg %p178
      %p185 = scmp.eq.s32.totalorder %s16, 7
      %p186 = por %p184, %p185
      %p187 = scmp.ne.s32.totalorder %s179, %s182
      %p188 = scmp.eq.s32.totalorder %s16, 0
      %p189 = por %p187, %p188
      %p190 = scmp.ne.s32.totalorder %s179, %s182
      %p191 = scmp.eq.s32.totalorder %s21, 7
      %p192 = por %p190, %p191
      %p193 = scmp.ne.s32.totalorder %s182, %s183
      %p194 = scmp.eq.s32.totalorder %s21, 0
      %p195 = por %p193, %p194
      %p196 = scmp.ne.s32.totalorder %s182, %s183
      %p197 = scmp.eq.s32.totalorder %s22, 7
      %p198 = por %p196, %p197
      %p200 = scmp.ne.s32.totalorder %s183, %s199
      %p201 = scmp.eq.s32.totalorder %s22, 0
      %p202 = por %p200, %p201
      %s203 = ssub.s32 %s25, %s34
      %p204 = scmp.eq.s32.totalorder %s203, 0
      %s206 = sadd.s32 %s205, 1
      %s207 = scalar_select %p204, %s205, %s206
      %p210 = pneg %p204
      %p211 = scmp.eq.s32.totalorder %s16, 7
      %p212 = por %p210, %p211
      %p213 = scmp.ne.s32.totalorder %s205, %s208
      %p214 = scmp.eq.s32.totalorder %s16, 0
      %p215 = por %p213, %p214
      %p216 = scmp.ne.s32.totalorder %s205, %s208
      %p217 = scmp.eq.s32.totalorder %s21, 7
      %p218 = por %p216, %p217
      %p219 = scmp.ne.s32.totalorder %s208, %s209
      %p220 = scmp.eq.s32.totalorder %s21, 0
      %p221 = por %p219, %p220
      %p222 = scmp.ne.s32.totalorder %s208, %s209
      %p223 = scmp.eq.s32.totalorder %s22, 7
      %p224 = por %p222, %p223
      %p226 = scmp.ne.s32.totalorder %s209, %s225
      %p227 = scmp.eq.s32.totalorder %s22, 0
      %p228 = por %p226, %p227
      %s229 = ssub.s32 %s23, %s42
      %s230 = ssub.s32 %s24, %s38
      %s231 = sor.u32 %s229, %s230
      %p232 = scmp.eq.s32.totalorder %s231, 0
      %s234 = sadd.s32 %s233, 1
      %s235 = scalar_select %p232, %s233, %s234
      %p238 = pneg %p232
      %p239 = scmp.eq.s32.totalorder %s16, 7
      %p240 = por %p238, %p239
      %p241 = scmp.ne.s32.totalorder %s233, %s236
      %p242 = scmp.eq.s32.totalorder %s16, 0
      %p243 = por %p241, %p242
      %p244 = scmp.ne.s32.totalorder %s233, %s236
      %p245 = scmp.eq.s32.totalorder %s21, 7
      %p246 = por %p244, %p245
      %p247 = scmp.ne.s32.totalorder %s236, %s237
      %p248 = scmp.eq.s32.totalorder %s21, 0
      %p249 = por %p247, %p248
      %p250 = scmp.ne.s32.totalorder %s236, %s237
      %p251 = scmp.eq.s32.totalorder %s22, 7
      %p252 = por %p250, %p251
      %p254 = scmp.ne.s32.totalorder %s237, %s253
      %p255 = scmp.eq.s32.totalorder %s22, 0
      %p256 = por %p254, %p255
      %p257 = scmp.le.s32.totalorder 1, %s16
      %p258 = scmp.lt.s32.totalorder %s16, 9
      %p259 = pnand %p257, %p258
      %p260 = pneg %p259
      // Predicated region
      $region9: #{tpu_custom_call.1} parent=5 // pred_check
        _
      $region10: #{tpu_custom_call.1} parent=5 // pred_check_branch
        %262 = sbr.rel (%p259) target = $region12
      $region11: #{tpu_custom_call.1} parent=5 // pred_region
        %s263 = ssub.s32 %s16, 1
      $region12: #{tpu_custom_call.1} parent=5 // pred_fallthru
        _
      %p264 = scmp.lt.s32.totalorder %s16, 8
      // Predicated region
      $region13: #{tpu_custom_call.1} parent=5 // pred_check
        %p265 = pneg %p264
      $region14: #{tpu_custom_call.1} parent=5 // pred_check_branch
        %267 = sbr.rel (%p265) target = $region16
      $region15: #{tpu_custom_call.1} parent=5 // pred_region
        // Predicated region
        $region17: #{tpu_custom_call.1} parent=15 // pred_check
          %p268 = pneg %p57
        $region18: #{tpu_custom_call.1} parent=15 // pred_check_branch
          %270 = sbr.rel (%p268) target = $region20
        $region19: #{tpu_custom_call.1} parent=15 // pred_region
          %p271 = scmp.lt.s32.totalorder %s23, 1
          %s272 = scalar_select %p271, %s23, 1
          %p273 = scmp.lt.s32.totalorder %s24, 0
          %s274 = scalar_select %p273, %s24, 0
          %s275 = sadd.s32 %s274, %s272
          %s276 = smul.addr %s275, 4
          %s277 = scalar_lea.vmem %s0, %s276
        $region20: #{tpu_custom_call.1} parent=15 // pred_fallthru
          _
        // Predicated region
        $region21: #{tpu_custom_call.1} parent=15 // pred_check
          %p278 = pneg %p83
        $region22: #{tpu_custom_call.1} parent=15 // pred_check_branch
          %280 = sbr.rel (%p278) target = $region24
        $region23: #{tpu_custom_call.1} parent=15 // pred_region
          %p281 = scmp.lt.s32.totalorder %s23, 1
          %s282 = scalar_select %p281, %s23, 1
          %s283 = smul.addr %s282, 2
          %s284 = smul.addr %s283, 4
          %s285 = scalar_lea.vmem %s1, %s284
        $region24: #{tpu_custom_call.1} parent=15 // pred_fallthru
          _
        // Predicated region
        $region25: #{tpu_custom_call.1} parent=15 // pred_check
          %p286 = pneg %p111
        $region26: #{tpu_custom_call.1} parent=15 // pred_check_branch
          %288 = sbr.rel (%p286) target = $region28
        $region27: #{tpu_custom_call.1} parent=15 // pred_region
          %p289 = scmp.lt.s32.totalorder %s23, 1
          %s290 = scalar_select %p289, %s23, 1
          %p291 = scmp.lt.s32.totalorder %s24, 0
          %s292 = scalar_select %p291, %s24, 0
          %s293 = sadd.s32 %s292, %s290
          %s294 = smul.addr %s293, 2
          %s295 = scalar_lea.vmem %s2, %s294
        $region28: #{tpu_custom_call.1} parent=15 // pred_fallthru
          _
        // Predicated region
        $region29: #{tpu_custom_call.1} parent=15 // pred_check
          %p296 = pneg %p137
        $region30: #{tpu_custom_call.1} parent=15 // pred_check_branch
          %298 = sbr.rel (%p296) target = $region32
        $region31: #{tpu_custom_call.1} parent=15 // pred_region
          %p299 = scmp.lt.s32.totalorder %s25, 3
          %s300 = scalar_select %p299, %s25, 3
          %s301 = smul.addr %s300, 4
          %s302 = smul.addr %s301, 4
          %s303 = scalar_lea.vmem %s3, %s302
        $region32: #{tpu_custom_call.1} parent=15 // pred_fallthru
          _
        // Predicated region
        $region33: #{tpu_custom_call.1} parent=15 // pred_check
          %p304 = pneg %p163
        $region34: #{tpu_custom_call.1} parent=15 // pred_check_branch
          %306 = sbr.rel (%p304) target = $region36
        $region35: #{tpu_custom_call.1} parent=15 // pred_region
          %p307 = scmp.lt.s32.totalorder %s25, 3
          %s308 = scalar_select %p307, %s25, 3
          %s309 = smul.addr %s308, 4
          %s310 = smul.addr %s309, 4
          %s311 = scalar_lea.vmem %s4, %s310
        $region36: #{tpu_custom_call.1} parent=15 // pred_fallthru
          _
        // Predicated region
        $region37: #{tpu_custom_call.1} parent=15 // pred_check
          %p312 = pneg %p189
        $region38: #{tpu_custom_call.1} parent=15 // pred_check_branch
          %314 = sbr.rel (%p312) target = $region40
        $region39: #{tpu_custom_call.1} parent=15 // pred_region
          %p315 = scmp.lt.s32.totalorder %s25, 3
          %s316 = scalar_select %p315, %s25, 3
          %s317 = smul.addr %s316, 4
          %s318 = smul.addr %s317, 4
          %s319 = scalar_lea.vmem %s5, %s318
        $region40: #{tpu_custom_call.1} parent=15 // pred_fallthru
          _
        // Predicated region
        $region41: #{tpu_custom_call.1} parent=15 // pred_check
          %p320 = pneg %p215
        $region42: #{tpu_custom_call.1} parent=15 // pred_check_branch
          %322 = sbr.rel (%p320) target = $region44
        $region43: #{tpu_custom_call.1} parent=15 // pred_region
          %p323 = scmp.lt.s32.totalorder %s25, 3
          %s324 = scalar_select %p323, %s25, 3
          %s325 = smul.addr %s324, 2
          %s326 = smul.addr %s325, 4
          %s327 = scalar_lea.vmem %s6, %s326
        $region44: #{tpu_custom_call.1} parent=15 // pred_fallthru
          _
      $region16: #{tpu_custom_call.1} parent=5 // pred_fallthru
        _
      %p328 = scmp.le.s32.totalorder 1, %s16
      %p329 = scmp.lt.s32.totalorder %s16, 9
      %p330 = pnand %p328, %p329
      %p331 = pneg %p330
      // Predicated region
      $region45: #{tpu_custom_call.1} parent=5 // pred_check
        _
      $region46: #{tpu_custom_call.1} parent=5 // pred_check_branch
        %333 = sbr.rel (%p330) target = $region48
      $region47: #{tpu_custom_call.1} parent=5 // pred_region
        %s334 = ssub.s32 %s16, 1
        %p335 = scmp.lt.s32.totalorder %s26, 1
        %s336 = scalar_select %p335, %s26, 1
        %p337 = scmp.lt.s32.totalorder %s27, 0
        %s338 = scalar_select %p337, %s27, 0
        %s339 = sadd.s32 %s338, %s336
        %s340 = smul.addr %s339, 4
        %s341 = scalar_lea.vmem %s0, %s340
        %p342 = pneg %p63
        %p343 = pneg %p60
        %p344 = scmp.lt.s32.totalorder %s26, 1
        %s345 = scalar_select %p344, %s26, 1
        %s346 = smul.addr %s345, 2
        %s347 = smul.addr %s346, 4
        %s348 = scalar_lea.vmem %s1, %s347
        %p349 = pneg %p89
        %p350 = pneg %p86
        %p351 = scmp.lt.s32.totalorder %s26, 1
        %s352 = scalar_select %p351, %s26, 1
        %p353 = scmp.lt.s32.totalorder %s27, 0
        %s354 = scalar_select %p353, %s27, 0
        %s355 = sadd.s32 %s354, %s352
        %s356 = smul.addr %s355, 2
        %s357 = scalar_lea.vmem %s2, %s356
        %p358 = pneg %p117
        %p359 = pneg %p114
        %p360 = scmp.lt.s32.totalorder %s28, 3
        %s361 = scalar_select %p360, %s28, 3
        %s362 = smul.addr %s361, 4
        %s363 = smul.addr %s362, 4
        %s364 = scalar_lea.vmem %s3, %s363
        %p365 = pneg %p143
        %p366 = pneg %p140
        %p367 = scmp.lt.s32.totalorder %s28, 3
        %s368 = scalar_select %p367, %s28, 3
        %s369 = smul.addr %s368, 4
        %s370 = smul.addr %s369, 4
        %s371 = scalar_lea.vmem %s4, %s370
        %p372 = pneg %p169
        %p373 = pneg %p166
        %p374 = scmp.lt.s32.totalorder %s28, 3
        %s375 = scalar_select %p374, %s28, 3
        %s376 = smul.addr %s375, 4
        %s377 = smul.addr %s376, 4
        %s378 = scalar_lea.vmem %s5, %s377
        %p379 = pneg %p195
        %p380 = pneg %p192
        %p381 = scmp.lt.s32.totalorder %s28, 3
        %s382 = scalar_select %p381, %s28, 3
        %s383 = smul.addr %s382, 2
        %s384 = smul.addr %s383, 4
        %s385 = scalar_lea.vmem %s6, %s384
        %p386 = pneg %p221
        %p387 = pneg %p218
        %p388 = pneg %p249
        %p389 = pneg %p246
        %s390 = sand.u32 %s236, 1
        %s391 = scalar_lea.sflag [#allocation4], %s390
        %s392 = sand.u32 %s236, 1
        %s393 = smul.addr %s392, 8
        %s394 = scalar_lea.vmem [#allocation3], %s393
        %p395 = scmp.lt.s32.totalorder %s26, 1
        %s396 = scalar_select %p395, %s26, 1
        %p397 = scmp.lt.s32.totalorder %s27, 0
        %s398 = scalar_select %p397, %s27, 0
        %s399 = sadd.s32 %s398, %s396
        %s400 = smul.addr %s399, 4
        %s401 = scalar_lea.vmem %s0, %s400
        %p402 = scmp.lt.s32.totalorder %s26, 1
        %s403 = scalar_select %p402, %s26, 1
        %s404 = smul.addr %s403, 2
        %s405 = smul.addr %s404, 4
        %s406 = scalar_lea.vmem %s1, %s405
        %p407 = scmp.lt.s32.totalorder %s26, 1
        %s408 = scalar_select %p407, %s26, 1
        %p409 = scmp.lt.s32.totalorder %s27, 0
        %s410 = scalar_select %p409, %s27, 0
        %s411 = sadd.s32 %s410, %s408
        %s412 = smul.addr %s411, 2
        %s413 = scalar_lea.vmem %s2, %s412
        %p414 = scmp.lt.s32.totalorder %s28, 3
        %s415 = scalar_select %p414, %s28, 3
        %s416 = smul.addr %s415, 4
        %s417 = smul.addr %s416, 4
        %s418 = scalar_lea.vmem %s3, %s417
        %p419 = scmp.lt.s32.totalorder %s28, 3
        %s420 = scalar_select %p419, %s28, 3
        %s421 = smul.addr %s420, 4
        %s422 = smul.addr %s421, 4
        %s423 = scalar_lea.vmem %s4, %s422
        %p424 = scmp.lt.s32.totalorder %s28, 3
        %s425 = scalar_select %p424, %s28, 3
        %s426 = smul.addr %s425, 4
        %s427 = smul.addr %s426, 4
        %s428 = scalar_lea.vmem %s5, %s427
        %p429 = scmp.lt.s32.totalorder %s28, 3
        %s430 = scalar_select %p429, %s28, 3
        %s431 = smul.addr %s430, 2
        %s432 = smul.addr %s431, 4
        %s433 = scalar_lea.vmem %s6, %s432
        %p435 = scmp.eq.s32.totalorder %s28, 0
        // Predicated region
        $region49: #{tpu_custom_call.1} parent=47 // pred_check
          %p436 = pneg %p435
        $region50: #{tpu_custom_call.1} parent=47 // pred_check_branch
          %438 = sbr.rel (%p436) target = $region52
        $region51: #{tpu_custom_call.1} parent=47 // pred_region
          %vm439 = vcmask 261120
          %440 = vst.msk [vmem:[%s394] sm:$0xff] %vm439, 0.0
          %v441 = vld [vmem:[%s413] sm:$0x3]
          %v442 = vunpack.c.0.s8 %v441
          %v443 = vcvt.s32.f32 %v442
          %v444 = vmul.f32 %v443, -1e+09
          %vm445 = vcmask 130048
          %446 = vst.msk [vmem:[#allocation2] sm:$0xff] %vm445, %v444
        $region52: #{tpu_custom_call.1} parent=47 // pred_fallthru
          _
        %v447 = vld [vmem:[%s401] sm:$0xf]
        %v448 = vld [vmem:[%s406] sm:$0xf]
        %v449 = vld [vmem:[%s406 + $0x4] sm:$0xf]
        %v450 = vld [vmem:[%s418] sm:$0xf]
        %v451 = vld [vmem:[%s418 + $0x4] sm:$0xf]
        %v452 = vld [vmem:[%s418 + $0x8] sm:$0xf]
        %v453 = vld [vmem:[%s418 + $0xc] sm:$0xf]
        %v458 = vunpack.c.l.b16 %v450
        %v459 = vunpack.c.l.b16 %v451
        %v460 = vunpack.c.l.b16 %v452
        %v461 = vunpack.c.l.b16 %v453
        %v462 = vpack.c.b16 %v459, %v458
        %v463 = vpack.c.b16 %v461, %v460
        %vm466 = vcmask 261120
        %v468 = vsel %vm466, %v447, 0
        %470 = vmatprep.subr.bf16.mxu0 0
        %471 = vmatpush1.bf16.msra.mxu0 %v462
        %472 = vmatprep.subr.bf16.mxu0 0
        %473 = vmatpush1.bf16.msra.mxu0 %v463
        %474 = vmatprep.subr.bf16.mxu0 0
        %475 = vmatpush1.bf16.msra.mxu0 0
        %476 = vmatprep.subr.bf16.mxu0 0
        %477 = vmatpush1.bf16.msra.mxu0 0
        %478 = vmatprep.subr.bf16.mxu0 0
        %479 = vmatpush1.bf16.msra.mxu0 0
        %480 = vmatprep.subr.bf16.mxu0 0
        %481 = vmatpush1.bf16.msra.mxu0 0
        %482 = vmatprep.subr.bf16.mxu0 0
        %483 = vmatpush1.bf16.msra.mxu0 0
        %484 = vmatprep.subr.bf16.mxu0 0
        %485 = vmatpush1.bf16.msra.mxu0 0
        %486 = vmatprep.subr.bf16.mxu0 0
        %487 = vmatpush1.bf16.msra.mxu0 0
        %488 = vmatprep.subr.bf16.mxu0 0
        %489 = vmatpush1.bf16.msra.mxu0 0
        %490 = vmatprep.subr.bf16.mxu0 0
        %491 = vmatpush1.bf16.msra.mxu0 0
        %492 = vmatprep.subr.bf16.mxu0 0
        %493 = vmatpush1.bf16.msra.mxu0 0
        %494 = vmatprep.subr.bf16.mxu0 0
        %495 = vmatpush1.bf16.msra.mxu0 0
        %496 = vmatprep.subr.bf16.mxu0 0
        %497 = vmatpush1.bf16.msra.mxu0 0
        %498 = vmatprep.subr.bf16.mxu0 0
        %499 = vmatpush1.bf16.msra.mxu0 0
        %500 = vmatprep.subr.bf16.mxu0 0
        %501 = vmatpush1.bf16.msra.mxu0 0
        %502 = vmatprep.mubr.bf16.mxu0 0
        %503 = vmatmul.mubr.bf16.gmra.mrb[0].mxu0 %v468
        %v504 = vpop.f32.mrb[0].mxu0
        %v505 = vadd.f32 0.0, %v504
        %v506 = vpop.f32.mrb[0].mxu0
        %v507 = vpop.f32.mrb[0].mxu0
        %v508 = vpop.f32.mrb[0].mxu0
        %509 = vdwg.mxu0
        %v510 = vmul.f32 %v505, 0.25
        %v511 = vld [vmem:[%s423] sm:$0xf]
        %v512 = vld [vmem:[%s423 + $0x4] sm:$0xf]
        %v513 = vld [vmem:[%s423 + $0x8] sm:$0xf]
        %v514 = vld [vmem:[%s423 + $0xc] sm:$0xf]
        %v517 = vunpack.c.l.b16 %v448
        %v518 = vunpack.c.l.b16 %v449
        %v519 = vpack.c.b16 %v518, %v517
        %v524 = vunpack.c.l.b16 %v511
        %v525 = vunpack.c.l.b16 %v512
        %v526 = vunpack.c.l.b16 %v513
        %v527 = vunpack.c.l.b16 %v514
        %v528 = vpack.c.b16 %v525, %v524
        %v529 = vpack.c.b16 %v527, %v526
        %v533 = vsel %vm466, %v519, 0
        %535 = vmatprep.subr.bf16.mxu0 0
        %536 = vmatpush1.bf16.msra.mxu0 %v528
        %537 = vmatprep.subr.bf16.mxu0 0
        %538 = vmatpush1.bf16.msra.mxu0 %v529
        %539 = vmatprep.subr.bf16.mxu0 0
        %540 = vmatpush1.bf16.msra.mxu0 0
        %541 = vmatprep.subr.bf16.mxu0 0
        %542 = vmatpush1.bf16.msra.mxu0 0
        %543 = vmatprep.subr.bf16.mxu0 0
        %544 = vmatpush1.bf16.msra.mxu0 0
        %545 = vmatprep.subr.bf16.mxu0 0
        %546 = vmatpush1.bf16.msra.mxu0 0
        %547 = vmatprep.subr.bf16.mxu0 0
        %548 = vmatpush1.bf16.msra.mxu0 0
        %549 = vmatprep.subr.bf16.mxu0 0
        %550 = vmatpush1.bf16.msra.mxu0 0
        %551 = vmatprep.subr.bf16.mxu0 0
        %552 = vmatpush1.bf16.msra.mxu0 0
        %553 = vmatprep.subr.bf16.mxu0 0
        %554 = vmatpush1.bf16.msra.mxu0 0
        %555 = vmatprep.subr.bf16.mxu0 0
        %556 = vmatpush1.bf16.msra.mxu0 0
        %557 = vmatprep.subr.bf16.mxu0 0
        %558 = vmatpush1.bf16.msra.mxu0 0
        %559 = vmatprep.subr.bf16.mxu0 0
        %560 = vmatpush1.bf16.msra.mxu0 0
        %561 = vmatprep.subr.bf16.mxu0 0
        %562 = vmatpush1.bf16.msra.mxu0 0
        %563 = vmatprep.subr.bf16.mxu0 0
        %564 = vmatpush1.bf16.msra.mxu0 0
        %565 = vmatprep.subr.bf16.mxu0 0
        %566 = vmatpush1.bf16.msra.mxu0 0
        %567 = vmatprep.mubr.bf16.mxu0 0
        %568 = vmatmul.mubr.bf16.gmra.mrb[0].mxu0 %v533
        %v569 = vpop.f32.mrb[0].mxu0
        %v570 = vadd.f32 0.0, %v569
        %v571 = vpop.f32.mrb[0].mxu0
        %v572 = vpop.f32.mrb[0].mxu0
        %v573 = vadd.f32 0.0, %v572
        %v574 = vpop.f32.mrb[0].mxu0
        %575 = vdwg.mxu0
        %v576 = vld [vmem:[%s428] sm:$0xf]
        %v577 = vld [vmem:[%s428 + $0x4] sm:$0xf]
        %v578 = vld [vmem:[%s428 + $0x8] sm:$0xf]
        %v579 = vld [vmem:[%s428 + $0xc] sm:$0xf]
        %v584 = vunpack.c.l.b16 %v576
        %v585 = vunpack.c.l.b16 %v577
        %v586 = vunpack.c.l.b16 %v578
        %v587 = vunpack.c.l.b16 %v579
        %v588 = vpack.c.b16 %v585, %v584
        %v589 = vpack.c.b16 %v587, %v586
        %592 = vmatprep.subr.bf16.mxu0 0
        %593 = vmatpush1.bf16.msra.mxu0 %v588
        %594 = vmatprep.subr.bf16.mxu0 0
        %595 = vmatpush1.bf16.msra.mxu0 %v589
        %596 = vmatprep.subr.bf16.mxu0 0
        %597 = vmatpush1.bf16.msra.mxu0 0
        %598 = vmatprep.subr.bf16.mxu0 0
        %599 = vmatpush1.bf16.msra.mxu0 0
        %600 = vmatprep.subr.bf16.mxu0 0
        %601 = vmatpush1.bf16.msra.mxu0 0
        %602 = vmatprep.subr.bf16.mxu0 0
        %603 = vmatpush1.bf16.msra.mxu0 0
        %604 = vmatprep.subr.bf16.mxu0 0
        %605 = vmatpush1.bf16.msra.mxu0 0
        %606 = vmatprep.subr.bf16.mxu0 0
        %607 = vmatpush1.bf16.msra.mxu0 0
        %608 = vmatprep.subr.bf16.mxu0 0
        %609 = vmatpush1.bf16.msra.mxu0 0
        %610 = vmatprep.subr.bf16.mxu0 0
        %611 = vmatpush1.bf16.msra.mxu0 0
        %612 = vmatprep.subr.bf16.mxu0 0
        %613 = vmatpush1.bf16.msra.mxu0 0
        %614 = vmatprep.subr.bf16.mxu0 0
        %615 = vmatpush1.bf16.msra.mxu0 0
        %616 = vmatprep.subr.bf16.mxu0 0
        %617 = vmatpush1.bf16.msra.mxu0 0
        %618 = vmatprep.subr.bf16.mxu0 0
        %619 = vmatpush1.bf16.msra.mxu0 0
        %620 = vmatprep.subr.bf16.mxu0 0
        %621 = vmatpush1.bf16.msra.mxu0 0
        %622 = vmatprep.subr.bf16.mxu0 0
        %623 = vmatpush1.bf16.msra.mxu0 0
        %624 = vmatprep.mubr.bf16.mxu0 0
        %625 = vmatmul.mubr.bf16.gmra.mrb[0].mxu0 %v533
        %v626 = vpop.f32.mrb[0].mxu0
        %v627 = vadd.f32 0.0, %v626
        %v628 = vpop.f32.mrb[0].mxu0
        %v629 = vpop.f32.mrb[0].mxu0
        %v630 = vadd.f32 0.0, %v629
        %v631 = vpop.f32.mrb[0].mxu0
        %632 = vdwg.mxu0
        %v633 = vpack.c.bf16 %v510, %v510
        %v634 = vpack.c.bf16 %v573, %v570
        %v635 = vld [vmem:[#allocation2] sm:$0xff]
        %vm636 = vcmask 130048
        %v638 = vsel %vm636, %v633, 0
        %v641 = vsel %vm636, %v634, 0
        %643 = vmatprep.subr.bf16.mxu0 0
        %644 = vmatpush1.bf16.xpose.msra.mxu0 %v641
        %645 = vmatprep.subr.bf16.mxu0 0
        %646 = vmatpush1.bf16.xpose.msra.mxu0 0
        %647 = vmatprep.subr.bf16.mxu0 0
        %648 = vmatpush1.bf16.xpose.msra.mxu0 0
        %649 = vmatprep.subr.bf16.mxu0 0
        %650 = vmatpush1.bf16.xpose.msra.mxu0 0
        %651 = vmatprep.subr.bf16.mxu0 0
        %652 = vmatpush1.bf16.xpose.msra.mxu0 0
        %653 = vmatprep.subr.bf16.mxu0 0
        %654 = vmatpush1.bf16.xpose.msra.mxu0 0
        %655 = vmatprep.subr.bf16.mxu0 0
        %656 = vmatpush1.bf16.xpose.msra.mxu0 0
        %657 = vmatprep.subr.bf16.mxu0 0
        %658 = vmatpush1.bf16.xpose.msra.mxu0 0
        %659 = vmatprep.subr.bf16.mxu0 0
        %660 = vmatpush1.bf16.xpose.msra.mxu0 0
        %661 = vmatprep.subr.bf16.mxu0 0
        %662 = vmatpush1.bf16.xpose.msra.mxu0 0
        %663 = vmatprep.subr.bf16.mxu0 0
        %664 = vmatpush1.bf16.xpose.msra.mxu0 0
        %665 = vmatprep.subr.bf16.mxu0 0
        %666 = vmatpush1.bf16.xpose.msra.mxu0 0
        %667 = vmatprep.subr.bf16.mxu0 0
        %668 = vmatpush1.bf16.xpose.msra.mxu0 0
        %669 = vmatprep.subr.bf16.mxu0 0
        %670 = vmatpush1.bf16.xpose.msra.mxu0 0
        %671 = vmatprep.subr.bf16.mxu0 0
        %672 = vmatpush1.bf16.xpose.msra.mxu0 0
        %673 = vmatprep.subr.bf16.mxu0 0
        %674 = vmatpush1.bf16.xpose.msra.mxu0 0
        %675 = vmatprep.mubr.bf16.mxu0 0
        %676 = vmatmul.mubr.bf16.gmra.mrb[0].mxu0 %v638
        %v677 = vpop.f32.mrb[0].mxu0
        %v678 = vadd.f32 %v635, %v677
        %v679 = vpop.f32.mrb[0].mxu0
        %v680 = vpop.f32.mrb[0].mxu0
        %v681 = vpop.f32.mrb[0].mxu0
        %682 = vdwg.mxu0
        %v683 = vsel %vm636, %v678, -inf
        %684 = vmax.xlane.f32.xlu0 %v683
        %v685 = vpop.xlane.xlu0 %684
        %v686 = vsub.f32 %v678, %v685
        %v687 = vmul.f32 %v686, 1.442695
        %v688 = vpow.pop %v687
        %v689 = vsel %vm636, %v688, 0.0
        %690 = vadd.xlane.f32.xlu0 %v689
        %v691 = vpop.xlane.xlu0 %690
        %v692 = vrcp.pop %v691
        %v693 = vmul.f32 %v688, %v692
        %v694 = vpack.c.bf16 %v693, %v693
        %v695 = vpack.c.bf16 %v630, %v627
        %v697 = vsel %vm636, %v694, 0
        %699 = vmatprep.subr.bf16.mxu0 0
        %700 = vmatpush1.bf16.msra.mxu0 %v695
        %701 = vmatprep.subr.bf16.mxu0 0
        %702 = vmatpush1.bf16.msra.mxu0 0
        %703 = vmatprep.subr.bf16.mxu0 0
        %704 = vmatpush1.bf16.msra.mxu0 0
        %705 = vmatprep.subr.bf16.mxu0 0
        %706 = vmatpush1.bf16.msra.mxu0 0
        %707 = vmatprep.subr.bf16.mxu0 0
        %708 = vmatpush1.bf16.msra.mxu0 0
        %709 = vmatprep.subr.bf16.mxu0 0
        %710 = vmatpush1.bf16.msra.mxu0 0
        %711 = vmatprep.subr.bf16.mxu0 0
        %712 = vmatpush1.bf16.msra.mxu0 0
        %713 = vmatprep.subr.bf16.mxu0 0
        %714 = vmatpush1.bf16.msra.mxu0 0
        %715 = vmatprep.subr.bf16.mxu0 0
        %716 = vmatpush1.bf16.msra.mxu0 0
        %717 = vmatprep.subr.bf16.mxu0 0
        %718 = vmatpush1.bf16.msra.mxu0 0
        %719 = vmatprep.subr.bf16.mxu0 0
        %720 = vmatpush1.bf16.msra.mxu0 0
        %721 = vmatprep.subr.bf16.mxu0 0
        %722 = vmatpush1.bf16.msra.mxu0 0
        %723 = vmatprep.subr.bf16.mxu0 0
        %724 = vmatpush1.bf16.msra.mxu0 0
        %725 = vmatprep.subr.bf16.mxu0 0
        %726 = vmatpush1.bf16.msra.mxu0 0
        %727 = vmatprep.subr.bf16.mxu0 0
        %728 = vmatpush1.bf16.msra.mxu0 0
        %729 = vmatprep.subr.bf16.mxu0 0
        %730 = vmatpush1.bf16.msra.mxu0 0
        %731 = vmatprep.mubr.bf16.mxu0 0
        %732 = vmatmul.mubr.bf16.gmra.mrb[0].mxu0 %v697
        %v733 = vpop.f32.mrb[0].mxu0
        %v734 = vadd.f32 0.0, %v733
        %v735 = vpop.f32.mrb[0].mxu0
        %v736 = vpop.f32.mrb[0].mxu0
        %v737 = vpop.f32.mrb[0].mxu0
        %738 = vdwg.mxu0
        %v739 = vld [vmem:[%s394] sm:$0xff]
        %v740 = vpack.c.bf16 %v734, %v734
        %v741 = vld [vmem:[%s433] sm:$0xf]
        %v742 = vld [vmem:[%s433 + $0x4] sm:$0xf]
        %v745 = vunpack.c.l.b16 %v741
        %v746 = vunpack.c.l.b16 %v742
        %v747 = vpack.c.b16 %v746, %v745
        %v750 = vsel %vm636, %v740, 0
        %752 = vmatprep.subr.bf16.mxu0 0
        %753 = vmatpush1.bf16.msra.mxu0 %v747
        %754 = vmatprep.subr.bf16.mxu0 0
        %755 = vmatpush1.bf16.msra.mxu0 0
        %756 = vmatprep.subr.bf16.mxu0 0
        %757 = vmatpush1.bf16.msra.mxu0 0
        %758 = vmatprep.subr.bf16.mxu0 0
        %759 = vmatpush1.bf16.msra.mxu0 0
        %760 = vmatprep.subr.bf16.mxu0 0
        %761 = vmatpush1.bf16.msra.mxu0 0
        %762 = vmatprep.subr.bf16.mxu0 0
        %763 = vmatpush1.bf16.msra.mxu0 0
        %764 = vmatprep.subr.bf16.mxu0 0
        %765 = vmatpush1.bf16.msra.mxu0 0
        %766 = vmatprep.subr.bf16.mxu0 0
        %767 = vmatpush1.bf16.msra.mxu0 0
        %768 = vmatprep.subr.bf16.mxu0 0
        %769 = vmatpush1.bf16.msra.mxu0 0
        %770 = vmatprep.subr.bf16.mxu0 0
        %771 = vmatpush1.bf16.msra.mxu0 0
        %772 = vmatprep.subr.bf16.mxu0 0
        %773 = vmatpush1.bf16.msra.mxu0 0
        %774 = vmatprep.subr.bf16.mxu0 0
        %775 = vmatpush1.bf16.msra.mxu0 0
        %776 = vmatprep.subr.bf16.mxu0 0
        %777 = vmatpush1.bf16.msra.mxu0 0
        %778 = vmatprep.subr.bf16.mxu0 0
        %779 = vmatpush1.bf16.msra.mxu0 0
        %780 = vmatprep.subr.bf16.mxu0 0
        %781 = vmatpush1.bf16.msra.mxu0 0
        %782 = vmatprep.subr.bf16.mxu0 0
        %783 = vmatpush1.bf16.msra.mxu0 0
        %784 = vmatprep.mubr.bf16.mxu0 0
        %785 = vmatmul.mubr.bf16.gmra.mrb[0].mxu0 %v750
        %v786 = vpop.f32.mrb[0].mxu0
        %v787 = vadd.f32 0.0, %v786
        %v788 = vpop.f32.mrb[0].mxu0
        %v789 = vpop.f32.mrb[0].mxu0
        %v790 = vpop.f32.mrb[0].mxu0
        %791 = vdwg.mxu0
        %v792 = vadd.f32 %v739, %v787
        %793 = vst.msk [vmem:[%s394] sm:$0xff] %vm466, %v792
        %s794 = sand.u32 %s236, 1
        %s795 = scalar_lea.sflag [#allocation4], %s794
        %s796 = sand.u32 %s236, 1
        %s797 = smul.addr %s796, 8
        %s798 = scalar_lea.vmem [#allocation3], %s797
        // Predicated region
        $region53: #{tpu_custom_call.1} parent=47 // pred_check
          %p799 = pneg %p246
        $region54: #{tpu_custom_call.1} parent=47 // pred_check_branch
          %801 = sbr.rel (%p799) target = $region56
        $region55: #{tpu_custom_call.1} parent=47 // pred_region
          %s803 = ssub.s32 128, 128
          %804 = vsyncadd %s795, %s803
          %s805 = sadd.s32 %s27, %s26
          %s806 = smul.addr %s805, 128
          %s807 = scalar_lea.hbm %s7, %s806
          %s809 = sshll.u32 %s798, 4
          %s810 = int_to_ptr.vmem [resolvable:$true] %s809
          %812 = dma.vmem_to_hbm [thread:$0]  %s810, 128, %s807, %s795
        $region56: #{tpu_custom_call.1} parent=47 // pred_fallthru
          _
      $region48: #{tpu_custom_call.1} parent=5 // pred_fallthru
        _
      %p813 = scmp.le.s32.totalorder 2, %s16
      // Predicated region
      $region57: #{tpu_custom_call.1} parent=5 // pred_check
        %p814 = pneg %p813
      $region58: #{tpu_custom_call.1} parent=5 // pred_check_branch
        %816 = sbr.rel (%p814) target = $region60
      $region59: #{tpu_custom_call.1} parent=5 // pred_region
        %s817 = ssub.s32 %s16, 2
        // Predicated region
        $region61: #{tpu_custom_call.1} parent=59 // pred_check
          %p818 = pneg %p252
        $region62: #{tpu_custom_call.1} parent=59 // pred_check_branch
          %820 = sbr.rel (%p818) target = $region64
        $region63: #{tpu_custom_call.1} parent=59 // pred_region
          %s821 = sand.u32 %s237, 1
          %s822 = scalar_lea.sflag [#allocation4], %s821
          %s823 = sand.u32 %s237, 1
          %s824 = smul.addr %s823, 8
          %s825 = scalar_lea.vmem [#allocation3], %s824
          %826 = dma.done %s822, 128
        $region64: #{tpu_custom_call.1} parent=59 // pred_fallthru
          _
      $region60: #{tpu_custom_call.1} parent=5 // pred_fallthru
        _
    $region6: #{tpu_custom_call.1} parent=1 // loop_footer
      %s20 = sadd.s32 1, %s16
    $region7: #{tpu_custom_call.1} parent=1 // loop_footer_branch
      %15 = sbr.rel target = $region3
    $region8: #{tpu_custom_call.1} parent=1 // loop_exit
      _
    %827 = vsyncpa [#allocation4], 1
    %s828 = scalar_lea.sflag [#allocation4], 1
    %829 = vsyncpa %s828, 1

</llo_original>
